<compile_context>
chip_gen: v5e
topology: v5e:2x2
jax: 0.10.0
libtpu: 0.0.40
codegen_flags: <defaults>
</compile_context>

<pallas_src>
import functools

import jax
import jax.numpy as jnp
from jax.experimental import pallas as pl
from jax.experimental.pallas import tpu as pltpu

OUT_PAD = 128   # lane-dense output slab width (one full vreg lane width)
MIN_TILE = 16   # batch-tile granularity (bf16 sublane packing = 16 rows)


def _round_up(n, m):
    return ((n + m - 1) // m) * m


def _cdiv(a, b):
    return -(-a // b)


def _is_v5e():
    """Detect TPU v5e (128x128 MXU) -> prefer split layer-2 matmuls."""
    try:
        kind = jax.devices()[0].device_kind.lower()
    except Exception:
        return False
    return ("v5 lite" in kind) or ("v5e" in kind) or ("v5litepod" in kind)


def _a2c_fused_kernel(x_ref, w1_ref, w2_ref, w3_ref, b_ref, out_ref, *,
                      hidden, split_l2):
    """Fused two-head MLP: bf16 MXU matmuls, f32 accumulation, ReLU on the VPU.

    b_ref is a packed f32 (3, 2H) bias buffer: row0=b1, row1=b2, row2[:OUT_PAD]=b3.
    Output is a single lane-dense [tile_b, OUT_PAD] f32 slab (no masked vst.msk).
    """
    H = hidden
    out_w = out_ref.shape[-1]
    b1 = b_ref[0:1, :]
    b2 = b_ref[1:2, :]
    b3 = b_ref[2:3, :out_w]

    # Layer 1: shared-input fusion (bf16 operands, f32 accumulation on the MXU).
    h = jnp.dot(x_ref[...], w1_ref[...], preferred_element_type=jnp.float32) + b1
    h = jnp.maximum(h, 0.0).astype(w2_ref.dtype)

    # Layer 2.
    if split_l2:
        # v5e (128x128 MXU): two independent K=128 head matmuls -> no zero-block work.
        ha = jnp.dot(h[:, :H], w2_ref[0], preferred_element_type=jnp.float32) + b2[:, :H]
        hv = jnp.dot(h[:, H:], w2_ref[1], preferred_element_type=jnp.float32) + b2[:, H:]
        h2 = jnp.concatenate([ha, hv], axis=-1)
    else:
        # v6e/v7x (256-deep MXU): a single block-diagonal K=256 matmul is ~free.
        h2 = jnp.dot(h, w2_ref[...], preferred_element_type=jnp.float32) + b2
    h2 = jnp.maximum(h2, 0.0).astype(w3_ref.dtype)

    # Layer 3: lane-dense 128-wide output slab.
    y = jnp.dot(h2, w3_ref[...], preferred_element_type=jnp.float32) + b3
    out_ref[...] = y.astype(out_ref.dtype)


@functools.partial(
    jax.jit, static_argnames=("action_dim", "hidden", "split_l2", "tile_b"))
def _a2c_forward_packed(x, w1, w2, w3, bias, *, action_dim, hidden, split_l2,
                        tile_b=1024):
    B, state_dim = x.shape
    two_h = 2 * hidden
    out_pad = w3.shape[1]

    # Matmul operands in the weights' compute dtype (bf16): native MXU
    # throughput and half the x / weight DMA bytes.  Accumulation stays f32.
    x = x.astype(w1.dtype)

    # Batch tiling:
    #  * tile is a multiple of MIN_TILE (satisfies the (8,128)/bf16 tiling rule),
    #  * capped at tile_b (big enough to amortize ~0.35us per-step overhead),
    #  * capped at ~B/2 so large batches always give >=2 grid steps (v7x megacore).
    tile_b = max(_round_up(tile_b, MIN_TILE), MIN_TILE)
    tile = min(_round_up(max(B, 1), MIN_TILE), tile_b)
    half = _round_up(_cdiv(max(B, 1), 2), MIN_TILE)
    tile = max(min(tile, half), MIN_TILE)
    b_pad = _round_up(B, tile)
    if b_pad != B:
        x = jnp.pad(x, ((0, b_pad - B), (0, 0)))
    grid = (b_pad // tile,)

    l2_macs = hidden * hidden * 2 if split_l2 else two_h * two_h
    flops = 2 * b_pad * (state_dim * two_h + l2_macs + two_h * out_pad)
    bytes_accessed = (x.size * x.dtype.itemsize
                      + w1.size * w1.dtype.itemsize
                      + w2.size * w2.dtype.itemsize
                      + w3.size * w3.dtype.itemsize
                      + bias.size * bias.dtype.itemsize
                      + b_pad * out_pad * 4)

    if split_l2:
        w2_spec = pl.BlockSpec((2, hidden, hidden), lambda i: (0, 0, 0))
    else:
        w2_spec = pl.BlockSpec((two_h, two_h), lambda i: (0, 0))

    kernel = functools.partial(_a2c_fused_kernel, hidden=hidden,
                               split_l2=split_l2)

    out = pl.pallas_call(
        kernel,
        out_shape=jax.ShapeDtypeStruct((b_pad, out_pad), jnp.float32),
        grid=grid,
        in_specs=[
            pl.BlockSpec((tile, state_dim), lambda i: (i, 0)),   # x: batch-tiled
            pl.BlockSpec((state_dim, two_h), lambda i: (0, 0)),  # W1 (fetched once)
            w2_spec,                                             # W2 (fetched once)
            pl.BlockSpec((two_h, out_pad), lambda i: (0, 0)),    # W3 (fetched once)
            pl.BlockSpec((3, two_h), lambda i: (0, 0)),          # packed f32 biases
        ],
        out_specs=pl.BlockSpec((tile, out_pad), lambda i: (i, 0)),
        compiler_params=pltpu.CompilerParams(
            dimension_semantics=("parallel",)),
        cost_estimate=pl.CostEstimate(
            flops=flops, transcendentals=0, bytes_accessed=bytes_accessed),
    )(x, w1, w2, w3, bias)

    out = out[:B]
    logits = out[:, :action_dim]
    values = out[:, action_dim:action_dim + 1]
    return logits, values


def a2c_forward(x, packed, *, tile_b=1024):
    """x: [B, state_dim] f32. packed: output of pack_params. Returns (logits, values)."""
    return _a2c_forward_packed(
        x, packed["w1"], packed["w2"], packed["w3"], packed["bias"],
        action_dim=packed["action_dim"], hidden=packed["hidden"],
        split_l2=packed["split_layer2"], tile_b=tile_b)


def pack_params(p, state_dim, action_dim, hidden=128, *, split_layer2=None,
                compute_dtype=jnp.bfloat16):
    """Fuse the 12 per-layer tensors into 4 packed kernel buffers (off the hot path).

    Weights are stored in bf16 (native MXU dtype, half the DMA bytes); biases
    stay f32 so bias-add / ReLU run on f32 accumulators.  split_layer2=None
    auto-detects v5e and stores layer 2 as two stacked [H, H] head matrices
    instead of one block-diagonal [2H, 2H].
    """
    if split_layer2 is None:
        split_layer2 = _is_v5e()
    H = hidden
    assert action_dim + 1 <= OUT_PAD <= 2 * H

    # Layer 1: both heads share the input -> concatenate output features.
    w1 = jnp.concatenate([p["aw1"], p["vw1"]], axis=1).astype(compute_dtype)  # [S, 2H]
    b1 = jnp.concatenate([p["ab1"], p["vb1"]], axis=1)                        # [1, 2H]

    # Layer 2: stacked heads (v5e) or block-diagonal (v6e/v7x).
    if split_layer2:
        w2 = jnp.stack([p["aw2"], p["vw2"]], axis=0).astype(compute_dtype)    # [2, H, H]
    else:
        w2 = jnp.zeros((2 * H, 2 * H), jnp.float32)
        w2 = w2.at[:H, :H].set(p["aw2"]).at[H:, H:].set(p["vw2"])
        w2 = w2.astype(compute_dtype)                                         # [2H, 2H]
    b2 = jnp.concatenate([p["ab2"], p["vb2"]], axis=1)                        # [1, 2H]

    # Layer 3: both head outputs land in one lane-dense OUT_PAD-wide slab.
    w3 = jnp.zeros((2 * H, OUT_PAD), jnp.float32)
    w3 = w3.at[:H, :action_dim].set(p["aw3"])
    w3 = w3.at[H:, action_dim:action_dim + 1].set(p["vw3"])
    w3 = w3.astype(compute_dtype)                                             # [2H, 128]
    b3 = jnp.zeros((1, OUT_PAD), jnp.float32)
    b3 = b3.at[:, :action_dim].set(p["ab3"])
    b3 = b3.at[:, action_dim:action_dim + 1].set(p["vb3"])

    # Single f32 bias buffer -> one DMA instead of six.
    bias = jnp.zeros((3, 2 * H), jnp.float32)
    bias = bias.at[0].set(b1[0]).at[1].set(b2[0]).at[2, :OUT_PAD].set(b3[0])

    return dict(w1=w1, w2=w2, w3=w3, bias=bias,
                action_dim=action_dim, hidden=H,
                split_layer2=bool(split_layer2))


def init_params(key, state_dim, action_dim, hidden_size=128):
    """Deterministic init mimicking nn.Linear default (uniform +-1/sqrt(fan_in)).

    Weights are stored pre-transposed as [in, out]; biases as [1, out]. f32 master copy.
    """
    def linear(k, fan_in, fan_out):
        kw, kb = jax.random.split(k)
        bound = 1.0 / jnp.sqrt(fan_in)
        w = jax.random.uniform(kw, (fan_in, fan_out), jnp.float32, -bound, bound)
        b = jax.random.uniform(kb, (1, fan_out), jnp.float32, -bound, bound)
        return w, b

    keys = jax.random.split(key, 6)
    aw1, ab1 = linear(keys[0], state_dim, hidden_size)
    aw2, ab2 = linear(keys[1], hidden_size, hidden_size)
    aw3, ab3 = linear(keys[2], hidden_size, action_dim)
    vw1, vb1 = linear(keys[3], state_dim, hidden_size)
    vw2, vb2 = linear(keys[4], hidden_size, hidden_size)
    vw3, vb3 = linear(keys[5], hidden_size, 1)
    return dict(aw1=aw1, ab1=ab1, aw2=aw2, ab2=ab2, aw3=aw3, ab3=ab3,
                vw1=vw1, vb1=vb1, vw2=vw2, vb2=vb2, vw3=vw3, vb3=vb3)


def reference_forward(x, p):
    """Pure-JAX f32 reference replicating the PyTorch forward (unfused)."""
    def head(w1, b1, w2, b2, w3, b3):
        h = jnp.maximum(x @ w1 + b1, 0.0)
        h = jnp.maximum(h @ w2 + b2, 0.0)
        return h @ w3 + b3
    logits = head(p["aw1"], p["ab1"], p["aw2"], p["ab2"], p["aw3"], p["ab3"])
    values = head(p["vw1"], p["vb1"], p["vw2"], p["vb2"], p["vw3"], p["vb3"])
    return logits, values


if __name__ == "__main__":
    state_dim, action_dim, hidden = 32, 4, 128

    key = jax.random.PRNGKey(0)
    kx, kp, kx2 = jax.random.split(key, 3)
    params = init_params(kp, state_dim, action_dim, hidden)

    # Small batch (single grid step) and a ragged batch (padding + >=2 grid steps),
    # checked for BOTH layer-2 packings (v5e split and v6e/v7x block-diagonal).
    for batch, kb in ((8, kx), (50, kx2)):
        x = jax.random.normal(kb, (batch, state_dim), dtype=jnp.float32)
        ref_logits, ref_values = reference_forward(x, params)
        for split in (False, True):
            packed = pack_params(params, state_dim, action_dim, hidden,
                                 split_layer2=split)
            logits, values = a2c_forward(x, packed)
            jax.block_until_ready((logits, values))

            assert logits.shape == (batch, action_dim)
            assert values.shape == (batch, 1)
            # bf16 matmul operands (f32 accumulation) -> looser tolerance vs f32 ref.
            assert jnp.allclose(logits, ref_logits, atol=5e-2, rtol=5e-2), (
                "logits max err %.5f" % float(jnp.max(jnp.abs(logits - ref_logits))))
            assert jnp.allclose(values, ref_values, atol=5e-2, rtol=5e-2), (
                "values max err %.5f" % float(jnp.max(jnp.abs(values - ref_values))))

    print("KERNEL_OK")
</pallas_src>

<mosaic_0001>
module attributes {stable_mosaic.version = 11 : i64} {
  func.func @_a2c_fused_kernel(%arg0: i32, %arg1: memref<16x32xbf16, #tpu.memory_space<vmem>>, %arg2: memref<32x256xbf16, #tpu.memory_space<vmem>>, %arg3: memref<256x256xbf16, #tpu.memory_space<vmem>>, %arg4: memref<256x128xbf16, #tpu.memory_space<vmem>>, %arg5: memref<3x256xf32, #tpu.memory_space<vmem>>, %arg6: memref<16x128xf32, #tpu.memory_space<vmem>>) attributes {dimension_semantics = [#tpu.dimension_semantics<parallel>], iteration_bounds = array<i64: 1>, scalar_prefetch = 0 : i64, scratch_operands = 0 : i64, tpu.core_type = #tpu.core_type<tc>, window_params = [{transform_indices = @transform_0, window_bounds = array<i64: 16, 32>}, {pipeline_mode = #tpu.pipeline_mode<synchronous>, transform_indices = @transform_1, window_bounds = array<i64: 32, 256>}, {pipeline_mode = #tpu.pipeline_mode<synchronous>, transform_indices = @transform_2, window_bounds = array<i64: 256, 256>}, {pipeline_mode = #tpu.pipeline_mode<synchronous>, transform_indices = @transform_3, window_bounds = array<i64: 256, 128>}, {pipeline_mode = #tpu.pipeline_mode<synchronous>, transform_indices = @transform_4, window_bounds = array<i64: 3, 256>}, {transform_indices = @transform_5, window_bounds = array<i64: 16, 128>}]} {
    %c0 = arith.constant 0 : index
    %c0_0 = arith.constant 0 : index
    %0 = vector.load %arg5[%c0, %c0_0] : memref<3x256xf32, #tpu.memory_space<vmem>>, vector<1x256xf32>
    %c1 = arith.constant 1 : index
    %c0_1 = arith.constant 0 : index
    %1 = vector.load %arg5[%c1, %c0_1] : memref<3x256xf32, #tpu.memory_space<vmem>>, vector<1x256xf32>
    %c2 = arith.constant 2 : index
    %c0_2 = arith.constant 0 : index
    %2 = vector.load %arg5[%c2, %c0_2] : memref<3x256xf32, #tpu.memory_space<vmem>>, vector<1x128xf32>
    %c0_3 = arith.constant 0 : index
    %c0_4 = arith.constant 0 : index
    %3 = vector.load %arg1[%c0_3, %c0_4] : memref<16x32xbf16, #tpu.memory_space<vmem>>, vector<16x32xbf16>
    %c0_5 = arith.constant 0 : index
    %c0_6 = arith.constant 0 : index
    %4 = vector.load %arg2[%c0_5, %c0_6] : memref<32x256xbf16, #tpu.memory_space<vmem>>, vector<32x256xbf16>
    %cst = arith.constant dense<0.000000e+00> : vector<16x256xf32>
    %5 = tpu.matmul %3, %4, %cst {dimension_numbers = #tpu.dot_dimension_numbers<[1], [0], [0], [1], [0, 0, 1, 1], [], []>} : vector<16x32xbf16>, vector<32x256xbf16>, vector<16x256xf32> -> vector<16x256xf32>
    %6 = vector.broadcast %0 : vector<1x256xf32> to vector<16x256xf32>
    %7 = arith.addf %5, %6 : vector<16x256xf32>
    %cst_7 = arith.constant 0.000000e+00 : f32
    %8 = vector.broadcast %cst_7 : f32 to vector<16x256xf32>
    %9 = arith.maximumf %7, %8 : vector<16x256xf32>
    %10 = arith.truncf %9 : vector<16x256xf32> to vector<16x256xbf16>
    %c0_8 = arith.constant 0 : index
    %c0_9 = arith.constant 0 : index
    %11 = vector.load %arg3[%c0_8, %c0_9] : memref<256x256xbf16, #tpu.memory_space<vmem>>, vector<256x256xbf16>
    %cst_10 = arith.constant dense<0.000000e+00> : vector<16x256xf32>
    %12 = tpu.matmul %10, %11, %cst_10 {dimension_numbers = #tpu.dot_dimension_numbers<[1], [0], [0], [1], [0, 0, 1, 1], [], []>} : vector<16x256xbf16>, vector<256x256xbf16>, vector<16x256xf32> -> vector<16x256xf32>
    %13 = vector.broadcast %1 : vector<1x256xf32> to vector<16x256xf32>
    %14 = arith.addf %12, %13 : vector<16x256xf32>
    %cst_11 = arith.constant 0.000000e+00 : f32
    %15 = vector.broadcast %cst_11 : f32 to vector<16x256xf32>
    %16 = arith.maximumf %14, %15 : vector<16x256xf32>
    %17 = arith.truncf %16 : vector<16x256xf32> to vector<16x256xbf16>
    %c0_12 = arith.constant 0 : index
    %c0_13 = arith.constant 0 : index
    %18 = vector.load %arg4[%c0_12, %c0_13] : memref<256x128xbf16, #tpu.memory_space<vmem>>, vector<256x128xbf16>
    %cst_14 = arith.constant dense<0.000000e+00> : vector<16x128xf32>
    %19 = tpu.matmul %17, %18, %cst_14 {dimension_numbers = #tpu.dot_dimension_numbers<[1], [0], [0], [1], [0, 0, 1, 1], [], []>} : vector<16x256xbf16>, vector<256x128xbf16>, vector<16x128xf32> -> vector<16x128xf32>
    %20 = vector.broadcast %2 : vector<1x128xf32> to vector<16x128xf32>
    %21 = arith.addf %19, %20 : vector<16x128xf32>
    %c0_15 = arith.constant 0 : index
    %c0_16 = arith.constant 0 : index
    %22 = vector.load %arg6[%c0_15, %c0_16] : memref<16x128xf32, #tpu.memory_space<vmem>>, vector<16x128xf32>
    tpu.vector_store %arg6[%c0_15, %c0_16], %21 {strides = array<i32>} : memref<16x128xf32, #tpu.memory_space<vmem>>, vector<16x128xf32>,
    return
  }
  func.func @transform_0(%arg0: i32) -> (i32, i32) {
    %c0_i32 = arith.constant 0 : i32
    %c0_i32_0 = arith.constant 0 : i32
    return %arg0, %c0_i32 : i32, i32
  }
  func.func @transform_1(%arg0: i32) -> (i32, i32) {
    %c0_i32 = arith.constant 0 : i32
    %c0_i32_0 = arith.constant 0 : i32
    %c0_i32_1 = arith.constant 0 : i32
    return %c0_i32, %c0_i32_0 : i32, i32
  }
  func.func @transform_2(%arg0: i32) -> (i32, i32) {
    %c0_i32 = arith.constant 0 : i32
    %c0_i32_0 = arith.constant 0 : i32
    %c0_i32_1 = arith.constant 0 : i32
    return %c0_i32, %c0_i32_0 : i32, i32
  }
  func.func @transform_3(%arg0: i32) -> (i32, i32) {
    %c0_i32 = arith.constant 0 : i32
    %c0_i32_0 = arith.constant 0 : i32
    %c0_i32_1 = arith.constant 0 : i32
    return %c0_i32, %c0_i32_0 : i32, i32
  }
  func.func @transform_4(%arg0: i32) -> (i32, i32) {
    %c0_i32 = arith.constant 0 : i32
    %c0_i32_0 = arith.constant 0 : i32
    %c0_i32_1 = arith.constant 0 : i32
    return %c0_i32, %c0_i32_0 : i32, i32
  }
  func.func @transform_5(%arg0: i32) -> (i32, i32) {
    %c0_i32 = arith.constant 0 : i32
    %c0_i32_0 = arith.constant 0 : i32
    return %arg0, %c0_i32 : i32, i32
  }
}

</mosaic_0001>

<llo_original>
// kernel: _a2c_forward_packed.1
$region0: #{_a2c_forward_packed.1}
  #allocation0 [shape = 'u32[]', space=smem, size = 0x4, offset = 0x4, fixed_abs, tag = 'smem constant byte address 0x4 - core index']
  #allocation1 [shape = 'u32[72,128]{1,0:T(1,128)}', space=vmem, size = 0x9000, scoped, tag = 'internal scratch']
  %s0 = inlined_call_operand.vmem [shape: bf16[16,32], index: 0, kind: input, shape index: {}]
  %s1 = inlined_call_operand.hbm [shape: bf16[32,256], index: 1, kind: input, shape index: {}]
  %s2 = inlined_call_operand.hbm [shape: bf16[256,256], index: 2, kind: input, shape index: {}]
  %s3 = inlined_call_operand.hbm [shape: bf16[256,128], index: 3, kind: input, shape index: {}]
  %s4 = inlined_call_operand.vmem [shape: f32[3,256], index: 4, kind: input, shape index: {}]
  %s5 = inlined_call_operand.vmem [shape: f32[16,128], index: 5, kind: output, shape index: {}]
  %s6 = sld [smem:[#allocation0]]
  $region42: #{_a2c_forward_packed.1} parent=0
    _
  %s8 = ssub.s32 1, %s6
  %s9 = scalar_select 0, %s8, %s6
  $region1: #{_a2c_forward_packed.1} parent=0
    #allocation2 [shape = 'u8[16384]{0}', space=vmem, size = 0x4000, scoped, tag = 'input window, operand 1, single buffered']
    #allocation3 [shape = 's32[1]{0}', space=sflag, size = 0x4, scoped, tag = 'scoped memory for _a2c_forward_packed.1']
    #allocation4 [shape = 'u8[131072]{0}', space=vmem, size = 0x20000, scoped, tag = 'input window, operand 2, single buffered']
    #allocation5 [shape = 's32[1]{0}', space=sflag, size = 0x4, scoped, tag = 'scoped memory for _a2c_forward_packed.1']
    #allocation6 [shape = 'u8[65536]{0}', space=vmem, size = 0x10000, scoped, tag = 'input window, operand 3, single buffered']
    %10 = vsyncpa [#allocation3], 0
    %11 = vsyncpa [#allocation5], 0
    // Predicated region
    $region2: #{_a2c_forward_packed.1} parent=1 // pred_check
      _
    $region3: #{_a2c_forward_packed.1} parent=1 // pred_check_branch
      %13 = sbr.rel (0) target = $region5
    $region4: #{_a2c_forward_packed.1} parent=1 // pred_region
      _
    $region5: #{_a2c_forward_packed.1} parent=1 // pred_fallthru
      _
    // Predicated region
    $region6: #{_a2c_forward_packed.1} parent=1 // pred_check
      _
    $region7: #{_a2c_forward_packed.1} parent=1 // pred_check_branch
      %15 = sbr.rel (0) target = $region9
    $region8: #{_a2c_forward_packed.1} parent=1 // pred_region
      %17 = vsyncadd [#allocation3], 0
      %s18 = sshll.u32 %s1, 4
      %s19 = int_to_ptr.hbm [resolvable:$true] %s18
      %s20 = sshll.u32 [#allocation2], 4
      %s21 = int_to_ptr.vmem [resolvable:$true] %s20
      %26 = dma.hbm_to_vmem [thread:$0]  %s19, 512, %s21, [#allocation3], 128, 128, 8
    $region9: #{_a2c_forward_packed.1} parent=1 // pred_fallthru
      _
    // Predicated region
    $region10: #{_a2c_forward_packed.1} parent=1 // pred_check
      _
    $region11: #{_a2c_forward_packed.1} parent=1 // pred_check_branch
      %28 = sbr.rel (0) target = $region13
    $region12: #{_a2c_forward_packed.1} parent=1 // pred_region
      %30 = vsyncadd [#allocation5], 0
      %s31 = sshll.u32 %s2, 4
      %s32 = int_to_ptr.hbm [resolvable:$true] %s31
      %s33 = sshll.u32 [#allocation4], 4
      %s34 = int_to_ptr.vmem [resolvable:$true] %s33
      %39 = dma.hbm_to_vmem [thread:$0]  %s32, 4096, %s34, [#allocation5], 128, 128, 8
    $region13: #{_a2c_forward_packed.1} parent=1 // pred_fallthru
      _
    // Predicated region
    $region14: #{_a2c_forward_packed.1} parent=1 // pred_check
      _
    $region15: #{_a2c_forward_packed.1} parent=1 // pred_check_branch
      %41 = sbr.rel (0) target = $region17
    $region16: #{_a2c_forward_packed.1} parent=1 // pred_region
      %43 = vsyncadd [#allocation5], 0
      %s44 = sshll.u32 %s3, 4
      %s45 = int_to_ptr.hbm [resolvable:$true] %s44
      %s46 = sshll.u32 [#allocation6], 4
      %s47 = int_to_ptr.vmem [resolvable:$true] %s46
      %52 = dma.hbm_to_vmem [thread:$0]  %s45, 2048, %s47, [#allocation5], 64, 64, 4
    $region17: #{_a2c_forward_packed.1} parent=1 // pred_fallthru
      _
    // Predicated region
    $region18: #{_a2c_forward_packed.1} parent=1 // pred_check
      _
    $region19: #{_a2c_forward_packed.1} parent=1 // pred_check_branch
      %54 = sbr.rel (0) target = $region21
    $region20: #{_a2c_forward_packed.1} parent=1 // pred_region
      _
    $region21: #{_a2c_forward_packed.1} parent=1 // pred_fallthru
      _
    // Predicated region
    $region22: #{_a2c_forward_packed.1} parent=1 // pred_check
      _
    $region23: #{_a2c_forward_packed.1} parent=1 // pred_check_branch
      %56 = sbr.rel (0) target = $region25
    $region24: #{_a2c_forward_packed.1} parent=1 // pred_region
      %58 = dma.done [#allocation3], 512
    $region25: #{_a2c_forward_packed.1} parent=1 // pred_fallthru
      _
    // Predicated region
    $region26: #{_a2c_forward_packed.1} parent=1 // pred_check
      _
    $region27: #{_a2c_forward_packed.1} parent=1 // pred_check_branch
      %60 = sbr.rel (0) target = $region29
    $region28: #{_a2c_forward_packed.1} parent=1 // pred_region
      %62 = dma.done [#allocation5], 4096
    $region29: #{_a2c_forward_packed.1} parent=1 // pred_fallthru
      _
    // Predicated region
    $region30: #{_a2c_forward_packed.1} parent=1 // pred_check
      _
    $region31: #{_a2c_forward_packed.1} parent=1 // pred_check_branch
      %64 = sbr.rel (0) target = $region33
    $region32: #{_a2c_forward_packed.1} parent=1 // pred_region
      %66 = dma.done [#allocation5], 2048
    $region33: #{_a2c_forward_packed.1} parent=1 // pred_fallthru
      _
    %v68 = vld [vmem:[%s4] ss:$4 sm:$0x3]
    %s69 = scalar_lea.vmem %s4, 1
    %v70 = vld [vmem:[%s69] ss:$4 sm:$0x3]
    %v71 = vld [vmem:[%s4 + $0x2] sm:$0x1]
    %v72 = vld [vmem:[%s0] sm:$0xf]
    %v73 = vld [vmem:[%s0 + $0x4] sm:$0xf]
    %v74 = vld [vmem:[#allocation2] sm:$0xff]
    %v75 = vld [vmem:[#allocation2 + $0x8] sm:$0xff]
    %v76 = vld [vmem:[#allocation2 + $0x10] sm:$0xff]
    %v77 = vld [vmem:[#allocation2 + $0x18] sm:$0xff]
    %v79 = vperm.slane %v68, 0
    %v80 = vperm.slane %v68, 1
    %v85 = vunpack.c.l.b16 %v72
    %v86 = vunpack.c.l.b16 %v73
    %v87 = vpack.c.b16 %v86, %v85
    %v92 = vunpack.c.l.b16 %v74
    %v93 = vunpack.c.h.b16 %v74
    %v94 = vunpack.c.l.b16 %v75
    %v95 = vunpack.c.h.b16 %v75
    %v96 = vunpack.c.l.b16 %v76
    %v97 = vunpack.c.h.b16 %v76
    %v98 = vunpack.c.l.b16 %v77
    %v99 = vunpack.c.h.b16 %v77
    %v100 = vpack.c.b16 %v94, %v92
    %v101 = vpack.c.b16 %v95, %v93
    %v102 = vpack.c.b16 %v98, %v96
    %v103 = vpack.c.b16 %v99, %v97
    %vm108 = vcmask 261120
    %v110 = vsel %vm108, %v87, 0
    %112 = vmatpush.bf16.msra.mxu0 0
    %113 = vmatpush.bf16.msra.mxu0 0
    %114 = vmatpush.bf16.msra.mxu0 0
    %115 = vmatpush.bf16.msra.mxu0 0
    %116 = vmatpush.bf16.msra.mxu0 0
    %117 = vmatpush.bf16.msra.mxu0 0
    %118 = vmatpush.bf16.msra.mxu0 %v102
    %119 = vmatpush.bf16.msra.mxu0 %v100
    %120 = vmatmul.bf16.gmra.mxu0 %v110
    %v121 = vpop.f32.mrf.mxu0
    %v122 = vadd.f32 %v79, %v121
    %v123 = vpop.f32.mrf.mxu0
    %v124 = vadd.f32 %v79, %v123
    %125 = vdwg.mxu0
    %126 = vmatpush.bf16.msra.mxu0 0
    %127 = vmatpush.bf16.msra.mxu0 0
    %128 = vmatpush.bf16.msra.mxu0 0
    %129 = vmatpush.bf16.msra.mxu0 0
    %130 = vmatpush.bf16.msra.mxu0 0
    %131 = vmatpush.bf16.msra.mxu0 0
    %132 = vmatpush.bf16.msra.mxu0 %v103
    %133 = vmatpush.bf16.msra.mxu0 %v101
    %134 = vmatmul.bf16.gmra.mxu0 %v110
    %v135 = vpop.f32.mrf.mxu0
    %v136 = vadd.f32 %v80, %v135
    %v137 = vpop.f32.mrf.mxu0
    %v138 = vadd.f32 %v80, %v137
    %139 = vdwg.mxu0
    %v140 = vmax.f32 %v122, 0.0
    %v141 = vmax.f32 %v136, 0.0
    %v142 = vmax.f32 %v124, 0.0
    %v143 = vmax.f32 %v138, 0.0
    %v144 = vpack.c.bf16 %v142, %v140
    %v145 = vpack.c.bf16 %v143, %v141
    %v146 = vld [vmem:[#allocation4] sm:$0xff]
    %v147 = vld [vmem:[#allocation4 + $0x8] sm:$0xff]
    %v148 = vld [vmem:[#allocation4 + $0x10] sm:$0xff]
    %v149 = vld [vmem:[#allocation4 + $0x18] sm:$0xff]
    %v150 = vld [vmem:[#allocation4 + $0x20] sm:$0xff]
    %v151 = vld [vmem:[#allocation4 + $0x28] sm:$0xff]
    %v152 = vld [vmem:[#allocation4 + $0x30] sm:$0xff]
    %v153 = vld [vmem:[#allocation4 + $0x38] sm:$0xff]
    %v154 = vld [vmem:[#allocation4 + $0x40] sm:$0xff]
    %v155 = vld [vmem:[#allocation4 + $0x48] sm:$0xff]
    %v156 = vld [vmem:[#allocation4 + $0x50] sm:$0xff]
    %v157 = vld [vmem:[#allocation4 + $0x58] sm:$0xff]
    %v158 = vld [vmem:[#allocation4 + $0x60] sm:$0xff]
    %v159 = vld [vmem:[#allocation4 + $0x68] sm:$0xff]
    %v160 = vld [vmem:[#allocation4 + $0x70] sm:$0xff]
    %v161 = vld [vmem:[#allocation4 + $0x78] sm:$0xff]
    %v162 = vld [vmem:[#allocation4 + $0x80] sm:$0xff]
    %v163 = vld [vmem:[#allocation4 + $0x88] sm:$0xff]
    %v164 = vld [vmem:[#allocation4 + $0x90] sm:$0xff]
    %v165 = vld [vmem:[#allocation4 + $0x98] sm:$0xff]
    %v166 = vld [vmem:[#allocation4 + $0xa0] sm:$0xff]
    %v167 = vld [vmem:[#allocation4 + $0xa8] sm:$0xff]
    %v168 = vld [vmem:[#allocation4 + $0xb0] sm:$0xff]
    %v169 = vld [vmem:[#allocation4 + $0xb8] sm:$0xff]
    %v170 = vld [vmem:[#allocation4 + $0xc0] sm:$0xff]
    %v171 = vld [vmem:[#allocation4 + $0xc8] sm:$0xff]
    %v172 = vld [vmem:[#allocation4 + $0xd0] sm:$0xff]
    %v173 = vld [vmem:[#allocation4 + $0xd8] sm:$0xff]
    %v174 = vld [vmem:[#allocation4 + $0xe0] sm:$0xff]
    %v175 = vld [vmem:[#allocation4 + $0xe8] sm:$0xff]
    %v176 = vld [vmem:[#allocation4 + $0xf0] sm:$0xff]
    %v177 = vld [vmem:[#allocation4 + $0xf8] sm:$0xff]
    %v179 = vperm.slane %v70, 0
    %v180 = vperm.slane %v70, 1
    %v215 = vunpack.c.l.b16 %v146
    %v216 = vunpack.c.h.b16 %v146
    %v217 = vunpack.c.l.b16 %v147
    %v218 = vunpack.c.h.b16 %v147
    %v219 = vunpack.c.l.b16 %v148
    %v220 = vunpack.c.h.b16 %v148
    %v221 = vunpack.c.l.b16 %v149
    %v222 = vunpack.c.h.b16 %v149
    %v223 = vunpack.c.l.b16 %v150
    %v224 = vunpack.c.h.b16 %v150
    %v225 = vunpack.c.l.b16 %v151
    %v226 = vunpack.c.h.b16 %v151
    %v227 = vunpack.c.l.b16 %v152
    %v228 = vunpack.c.h.b16 %v152
    %v229 = vunpack.c.l.b16 %v153
    %v230 = vunpack.c.h.b16 %v153
    %v231 = vunpack.c.l.b16 %v154
    %v232 = vunpack.c.h.b16 %v154
    %v233 = vunpack.c.l.b16 %v155
    %v234 = vunpack.c.h.b16 %v155
    %v235 = vunpack.c.l.b16 %v156
    %v236 = vunpack.c.h.b16 %v156
    %v237 = vunpack.c.l.b16 %v157
    %v238 = vunpack.c.h.b16 %v157
    %v239 = vunpack.c.l.b16 %v158
    %v240 = vunpack.c.h.b16 %v158
    %v241 = vunpack.c.l.b16 %v159
    %v242 = vunpack.c.h.b16 %v159
    %v243 = vunpack.c.l.b16 %v160
    %v244 = vunpack.c.h.b16 %v160
    %v245 = vunpack.c.l.b16 %v161
    %v246 = vunpack.c.h.b16 %v161
    %v247 = vunpack.c.l.b16 %v162
    %v248 = vunpack.c.h.b16 %v162
    %v249 = vunpack.c.l.b16 %v163
    %v250 = vunpack.c.h.b16 %v163
    %v251 = vunpack.c.l.b16 %v164
    %v252 = vunpack.c.h.b16 %v164
    %v253 = vunpack.c.l.b16 %v165
    %v254 = vunpack.c.h.b16 %v165
    %v255 = vunpack.c.l.b16 %v166
    %v256 = vunpack.c.h.b16 %v166
    %v257 = vunpack.c.l.b16 %v167
    %v258 = vunpack.c.h.b16 %v167
    %v259 = vunpack.c.l.b16 %v168
    %v260 = vunpack.c.h.b16 %v168
    %v261 = vunpack.c.l.b16 %v169
    %v262 = vunpack.c.h.b16 %v169
    %v263 = vunpack.c.l.b16 %v170
    %v264 = vunpack.c.h.b16 %v170
    %v265 = vunpack.c.l.b16 %v171
    %v266 = vunpack.c.h.b16 %v171
    %v267 = vunpack.c.l.b16 %v172
    %v268 = vunpack.c.h.b16 %v172
    %v269 = vunpack.c.l.b16 %v173
    %v270 = vunpack.c.h.b16 %v173
    %v271 = vunpack.c.l.b16 %v174
    %v272 = vunpack.c.h.b16 %v174
    %v273 = vunpack.c.l.b16 %v175
    %v274 = vunpack.c.h.b16 %v175
    %v275 = vunpack.c.l.b16 %v176
    %v276 = vunpack.c.h.b16 %v176
    %v277 = vunpack.c.l.b16 %v177
    %v278 = vunpack.c.h.b16 %v177
    %v279 = vpack.c.b16 %v217, %v215
    %v280 = vpack.c.b16 %v218, %v216
    %v281 = vpack.c.b16 %v221, %v219
    %v282 = vpack.c.b16 %v222, %v220
    %v283 = vpack.c.b16 %v225, %v223
    %v284 = vpack.c.b16 %v226, %v224
    %v285 = vpack.c.b16 %v229, %v227
    %v286 = vpack.c.b16 %v230, %v228
    %v287 = vpack.c.b16 %v233, %v231
    %v288 = vpack.c.b16 %v234, %v232
    %v289 = vpack.c.b16 %v237, %v235
    %v290 = vpack.c.b16 %v238, %v236
    %v291 = vpack.c.b16 %v241, %v239
    %v292 = vpack.c.b16 %v242, %v240
    %v293 = vpack.c.b16 %v245, %v243
    %v294 = vpack.c.b16 %v246, %v244
    %v295 = vpack.c.b16 %v249, %v247
    %v296 = vpack.c.b16 %v250, %v248
    %v297 = vpack.c.b16 %v253, %v251
    %v298 = vpack.c.b16 %v254, %v252
    %v299 = vpack.c.b16 %v257, %v255
    %v300 = vpack.c.b16 %v258, %v256
    %v301 = vpack.c.b16 %v261, %v259
    %v302 = vpack.c.b16 %v262, %v260
    %v303 = vpack.c.b16 %v265, %v263
    %v304 = vpack.c.b16 %v266, %v264
    %v305 = vpack.c.b16 %v269, %v267
    %v306 = vpack.c.b16 %v270, %v268
    %v307 = vpack.c.b16 %v273, %v271
    %v308 = vpack.c.b16 %v274, %v272
    %v309 = vpack.c.b16 %v277, %v275
    %v310 = vpack.c.b16 %v278, %v276
    %343 = vmatpush.bf16.msra.mxu0 %v293
    %344 = vmatpush.bf16.msra.mxu0 %v291
    %345 = vmatpush.bf16.msra.mxu0 %v289
    %346 = vmatpush.bf16.msra.mxu0 %v287
    %347 = vmatpush.bf16.msra.mxu0 %v285
    %348 = vmatpush.bf16.msra.mxu0 %v283
    %349 = vmatpush.bf16.msra.mxu0 %v281
    %350 = vmatpush.bf16.msra.mxu0 %v279
    %351 = vmatmul.bf16.gmra.mxu0 %v144
    %v352 = vpop.f32.mrf.mxu0
    %v353 = vadd.f32 %v179, %v352
    %v354 = vpop.f32.mrf.mxu0
    %v355 = vadd.f32 %v179, %v354
    %356 = vdwg.mxu0
    %357 = vmatpush.bf16.msra.mxu0 %v309
    %358 = vmatpush.bf16.msra.mxu0 %v307
    %359 = vmatpush.bf16.msra.mxu0 %v305
    %360 = vmatpush.bf16.msra.mxu0 %v303
    %361 = vmatpush.bf16.msra.mxu0 %v301
    %362 = vmatpush.bf16.msra.mxu0 %v299
    %363 = vmatpush.bf16.msra.mxu0 %v297
    %364 = vmatpush.bf16.msra.mxu0 %v295
    %365 = vmatmul.bf16.gmra.mxu0 %v145
    %v366 = vpop.f32.mrf.mxu0
    %v367 = vadd.f32 %v353, %v366
    %v368 = vpop.f32.mrf.mxu0
    %v369 = vadd.f32 %v355, %v368
    %370 = vdwg.mxu0
    %371 = vmatpush.bf16.msra.mxu0 %v294
    %372 = vmatpush.bf16.msra.mxu0 %v292
    %373 = vmatpush.bf16.msra.mxu0 %v290
    %374 = vmatpush.bf16.msra.mxu0 %v288
    %375 = vmatpush.bf16.msra.mxu0 %v286
    %376 = vmatpush.bf16.msra.mxu0 %v284
    %377 = vmatpush.bf16.msra.mxu0 %v282
    %378 = vmatpush.bf16.msra.mxu0 %v280
    %379 = vmatmul.bf16.gmra.mxu0 %v144
    %v380 = vpop.f32.mrf.mxu0
    %v381 = vadd.f32 %v180, %v380
    %v382 = vpop.f32.mrf.mxu0
    %v383 = vadd.f32 %v180, %v382
    %384 = vdwg.mxu0
    %385 = vmatpush.bf16.msra.mxu0 %v310
    %386 = vmatpush.bf16.msra.mxu0 %v308
    %387 = vmatpush.bf16.msra.mxu0 %v306
    %388 = vmatpush.bf16.msra.mxu0 %v304
    %389 = vmatpush.bf16.msra.mxu0 %v302
    %390 = vmatpush.bf16.msra.mxu0 %v300
    %391 = vmatpush.bf16.msra.mxu0 %v298
    %392 = vmatpush.bf16.msra.mxu0 %v296
    %393 = vmatmul.bf16.gmra.mxu0 %v145
    %v394 = vpop.f32.mrf.mxu0
    %v395 = vadd.f32 %v381, %v394
    %v396 = vpop.f32.mrf.mxu0
    %v397 = vadd.f32 %v383, %v396
    %398 = vdwg.mxu0
    %v399 = vmax.f32 %v367, 0.0
    %v400 = vmax.f32 %v395, 0.0
    %v401 = vmax.f32 %v369, 0.0
    %v402 = vmax.f32 %v397, 0.0
    %v403 = vpack.c.bf16 %v401, %v399
    %v404 = vpack.c.bf16 %v402, %v400
    %v405 = vld [vmem:[#allocation6] sm:$0xf]
    %v406 = vld [vmem:[#allocation6 + $0x4] sm:$0xf]
    %v407 = vld [vmem:[#allocation6 + $0x8] sm:$0xf]
    %v408 = vld [vmem:[#allocation6 + $0xc] sm:$0xf]
    %v409 = vld [vmem:[#allocation6 + $0x10] sm:$0xf]
    %v410 = vld [vmem:[#allocation6 + $0x14] sm:$0xf]
    %v411 = vld [vmem:[#allocation6 + $0x18] sm:$0xf]
    %v412 = vld [vmem:[#allocation6 + $0x1c] sm:$0xf]
    %v413 = vld [vmem:[#allocation6 + $0x20] sm:$0xf]
    %v414 = vld [vmem:[#allocation6 + $0x24] sm:$0xf]
    %v415 = vld [vmem:[#allocation6 + $0x28] sm:$0xf]
    %v416 = vld [vmem:[#allocation6 + $0x2c] sm:$0xf]
    %v417 = vld [vmem:[#allocation6 + $0x30] sm:$0xf]
    %v418 = vld [vmem:[#allocation6 + $0x34] sm:$0xf]
    %v419 = vld [vmem:[#allocation6 + $0x38] sm:$0xf]
    %v420 = vld [vmem:[#allocation6 + $0x3c] sm:$0xf]
    %v421 = vld [vmem:[#allocation6 + $0x40] sm:$0xf]
    %v422 = vld [vmem:[#allocation6 + $0x44] sm:$0xf]
    %v423 = vld [vmem:[#allocation6 + $0x48] sm:$0xf]
    %v424 = vld [vmem:[#allocation6 + $0x4c] sm:$0xf]
    %v425 = vld [vmem:[#allocation6 + $0x50] sm:$0xf]
    %v426 = vld [vmem:[#allocation6 + $0x54] sm:$0xf]
    %v427 = vld [vmem:[#allocation6 + $0x58] sm:$0xf]
    %v428 = vld [vmem:[#allocation6 + $0x5c] sm:$0xf]
    %v429 = vld [vmem:[#allocation6 + $0x60] sm:$0xf]
    %v430 = vld [vmem:[#allocation6 + $0x64] sm:$0xf]
    %v431 = vld [vmem:[#allocation6 + $0x68] sm:$0xf]
    %v432 = vld [vmem:[#allocation6 + $0x6c] sm:$0xf]
    %v433 = vld [vmem:[#allocation6 + $0x70] sm:$0xf]
    %v434 = vld [vmem:[#allocation6 + $0x74] sm:$0xf]
    %v435 = vld [vmem:[#allocation6 + $0x78] sm:$0xf]
    %v436 = vld [vmem:[#allocation6 + $0x7c] sm:$0xf]
    %v437 = vperm.slane %v71, 0
    %v470 = vunpack.c.l.b16 %v405
    %v471 = vunpack.c.l.b16 %v406
    %v472 = vunpack.c.l.b16 %v407
    %v473 = vunpack.c.l.b16 %v408
    %v474 = vunpack.c.l.b16 %v409
    %v475 = vunpack.c.l.b16 %v410
    %v476 = vunpack.c.l.b16 %v411
    %v477 = vunpack.c.l.b16 %v412
    %v478 = vunpack.c.l.b16 %v413
    %v479 = vunpack.c.l.b16 %v414
    %v480 = vunpack.c.l.b16 %v415
    %v481 = vunpack.c.l.b16 %v416
    %v482 = vunpack.c.l.b16 %v417
    %v483 = vunpack.c.l.b16 %v418
    %v484 = vunpack.c.l.b16 %v419
    %v485 = vunpack.c.l.b16 %v420
    %v486 = vunpack.c.l.b16 %v421
    %v487 = vunpack.c.l.b16 %v422
    %v488 = vunpack.c.l.b16 %v423
    %v489 = vunpack.c.l.b16 %v424
    %v490 = vunpack.c.l.b16 %v425
    %v491 = vunpack.c.l.b16 %v426
    %v492 = vunpack.c.l.b16 %v427
    %v493 = vunpack.c.l.b16 %v428
    %v494 = vunpack.c.l.b16 %v429
    %v495 = vunpack.c.l.b16 %v430
    %v496 = vunpack.c.l.b16 %v431
    %v497 = vunpack.c.l.b16 %v432
    %v498 = vunpack.c.l.b16 %v433
    %v499 = vunpack.c.l.b16 %v434
    %v500 = vunpack.c.l.b16 %v435
    %v501 = vunpack.c.l.b16 %v436
    %v502 = vpack.c.b16 %v471, %v470
    %v503 = vpack.c.b16 %v473, %v472
    %v504 = vpack.c.b16 %v475, %v474
    %v505 = vpack.c.b16 %v477, %v476
    %v506 = vpack.c.b16 %v479, %v478
    %v507 = vpack.c.b16 %v481, %v480
    %v508 = vpack.c.b16 %v483, %v482
    %v509 = vpack.c.b16 %v485, %v484
    %v510 = vpack.c.b16 %v487, %v486
    %v511 = vpack.c.b16 %v489, %v488
    %v512 = vpack.c.b16 %v491, %v490
    %v513 = vpack.c.b16 %v493, %v492
    %v514 = vpack.c.b16 %v495, %v494
    %v515 = vpack.c.b16 %v497, %v496
    %v516 = vpack.c.b16 %v499, %v498
    %v517 = vpack.c.b16 %v501, %v500
    %534 = vmatpush.bf16.msra.mxu0 %v509
    %535 = vmatpush.bf16.msra.mxu0 %v508
    %536 = vmatpush.bf16.msra.mxu0 %v507
    %537 = vmatpush.bf16.msra.mxu0 %v506
    %538 = vmatpush.bf16.msra.mxu0 %v505
    %539 = vmatpush.bf16.msra.mxu0 %v504
    %540 = vmatpush.bf16.msra.mxu0 %v503
    %541 = vmatpush.bf16.msra.mxu0 %v502
    %542 = vmatmul.bf16.gmra.mxu0 %v403
    %v543 = vpop.f32.mrf.mxu0
    %v544 = vadd.f32 %v437, %v543
    %v545 = vpop.f32.mrf.mxu0
    %v546 = vadd.f32 %v437, %v545
    %547 = vdwg.mxu0
    %548 = vmatpush.bf16.msra.mxu0 %v517
    %549 = vmatpush.bf16.msra.mxu0 %v516
    %550 = vmatpush.bf16.msra.mxu0 %v515
    %551 = vmatpush.bf16.msra.mxu0 %v514
    %552 = vmatpush.bf16.msra.mxu0 %v513
    %553 = vmatpush.bf16.msra.mxu0 %v512
    %554 = vmatpush.bf16.msra.mxu0 %v511
    %555 = vmatpush.bf16.msra.mxu0 %v510
    %556 = vmatmul.bf16.gmra.mxu0 %v404
    %v557 = vpop.f32.mrf.mxu0
    %v558 = vadd.f32 %v544, %v557
    %v559 = vpop.f32.mrf.mxu0
    %v560 = vadd.f32 %v546, %v559
    %561 = vdwg.mxu0
    %562 = vst [vmem:[%s5] sm:$0xff] %v558
    %563 = vst [vmem:[%s5 + $0x8] sm:$0xff] %v560
    // Predicated region
    $region34: #{_a2c_forward_packed.1} parent=1 // pred_check
      _
    $region35: #{_a2c_forward_packed.1} parent=1 // pred_check_branch
      %565 = sbr.rel (0) target = $region37
    $region36: #{_a2c_forward_packed.1} parent=1 // pred_region
      _
    $region37: #{_a2c_forward_packed.1} parent=1 // pred_fallthru
      _
    // Predicated region
    $region38: #{_a2c_forward_packed.1} parent=1 // pred_check
      _
    $region39: #{_a2c_forward_packed.1} parent=1 // pred_check_branch
      %567 = sbr.rel (0) target = $region41
    $region40: #{_a2c_forward_packed.1} parent=1 // pred_region
      _
    $region41: #{_a2c_forward_packed.1} parent=1 // pred_fallthru
      _
    %568 = vsyncpa [#allocation3], 1
    %569 = vsyncpa [#allocation5], 1

</llo_original>
